<compile_context>
chip_gen: v7x
topology: tpu7x:2x2x1
jax: 0.10.0
libtpu: 0.0.40
codegen_flags: <defaults>
</compile_context>

<pallas_src>
import functools

import jax
import jax.numpy as jnp
from jax.experimental import pallas as pl
from jax.experimental.pallas import tpu as pltpu


def _triplet_block_kernel(a_ref, p_ref, n_ref, out_ref, *,
                          margin, eps, batch, block_rows):
    """One batch tile -> one f32 partial sum of relu(dp - dn + margin)."""
    i = pl.program_id(0)

    # Upcast to f32 for VPU math / reductions (required on v5e, free elsewhere).
    a = a_ref[...].astype(jnp.float32)
    p = p_ref[...].astype(jnp.float32)
    n = n_ref[...].astype(jnp.float32)

    dpos = a - p + eps                                   # (TB, D)  VPU
    dneg = a - n + eps                                   # (TB, D)  VPU

    # Row-wise L2 norms, kept 2-D (TB, 1): cross-lane reduce on XLU, sqrt on EUP.
    dist_pos = jnp.sqrt(jnp.sum(dpos * dpos, axis=-1, keepdims=True))
    dist_neg = jnp.sqrt(jnp.sum(dneg * dneg, axis=-1, keepdims=True))

    losses = jnp.maximum(dist_pos - dist_neg + margin, 0.0)     # (TB, 1)

    # Mask padded rows of a ragged last tile (applied AFTER relu, BEFORE sum,
    # so arbitrary/non-finite OOB data is replaced elementwise by 0.0).
    row_ids = jax.lax.broadcasted_iota(jnp.int32, losses.shape, 0)
    remaining = batch - i * block_rows
    losses = jnp.where(row_ids < remaining, losses, 0.0)

    # Per-block partial sum written to this block's own output slot
    # (no cross-iteration carry -> grid axis can be "parallel").
    out_ref[...] = jnp.reshape(jnp.sum(losses), (1, 1, 1))


def _vmem_capacity_bytes():
    """Physical VMEM of the current generation; conservative fallback."""
    try:
        return int(pltpu.get_tpu_info().vmem_capacity_bytes)
    except Exception:
        return 64 << 20          # assume v7x-like (smallest) if query unavailable


def _choose_block_rows(B, D, itemsize, row_align):
    """Largest aligned row tile s.t. 3 inputs x 2 buffers fit the input budget."""
    cap = _vmem_capacity_bytes()
    # v5e/v6e: 128 MiB physical -> spend ~48 MiB on input tiles.
    # v7x:      64 MiB per TC   -> stay conservative at ~24 MiB.
    budget = (48 << 20) if cap >= (100 << 20) else (24 << 20)
    tb = budget // (3 * 2 * D * itemsize)
    tb = (int(tb) // row_align) * row_align
    tb = max(row_align, tb)
    if tb >= B:
        return B                 # single full-extent tile (exempt from alignment)
    return tb


def triplet_loss(anchor, positive, negative, margin=0.5, eps=1e-6,
                 block_rows=None, cast_to_bf16=False):
    """Pallas TPU implementation of TripletLoss.forward. Returns a scalar (f32)."""
    assert anchor.shape == positive.shape == negative.shape
    assert anchor.ndim == 2

    if cast_to_bf16:
        # Halves HBM traffic on this bandwidth-bound kernel (slight numeric change).
        anchor = anchor.astype(jnp.bfloat16)
        positive = positive.astype(jnp.bfloat16)
        negative = negative.astype(jnp.bfloat16)

    B, D = anchor.shape
    itemsize = jnp.dtype(anchor.dtype).itemsize
    row_align = 16 if itemsize == 2 else (32 if itemsize == 1 else 8)

    if block_rows is None:
        block_rows = _choose_block_rows(B, D, itemsize, row_align)
    block_rows = min(int(block_rows), B)
    assert block_rows == B or block_rows % row_align == 0, (
        f"block_rows must equal B or be a multiple of {row_align}")

    num_blocks = pl.cdiv(B, block_rows)

    # Scoped VMEM: 3 inputs x 2 pipeline buffers x tile + headroom, bounded by a
    # generation-aware cap (64 MiB on v5e/v6e, 32 MiB on v7x).
    tile_bytes = block_rows * D * itemsize
    cap = _vmem_capacity_bytes()
    limit_cap = (64 << 20) if cap >= (100 << 20) else (32 << 20)
    vmem_limit = int(min(max(3 * 2 * tile_bytes + (2 << 20), 16 << 20), limit_cap))

    kernel = functools.partial(
        _triplet_block_kernel,
        margin=float(margin), eps=float(eps),
        batch=B, block_rows=block_rows)

    in_spec = pl.BlockSpec((block_rows, D), lambda i: (i, 0))

    partials = pl.pallas_call(
        kernel,
        out_shape=jax.ShapeDtypeStruct((num_blocks, 1, 1), jnp.float32),
        grid_spec=pltpu.PrefetchScalarGridSpec(
            num_scalar_prefetch=0,
            grid=(num_blocks,),
            in_specs=[in_spec, in_spec, in_spec],          # anchor / positive / negative
            out_specs=pl.BlockSpec((1, 1, 1), lambda i: (i, 0, 0)),
        ),
        compiler_params=pltpu.CompilerParams(
            dimension_semantics=("parallel",),             # megacore-safe: disjoint out blocks
            vmem_limit_bytes=vmem_limit,
        ),
    )(anchor, positive, negative)

    # Final reduction + mean in the wrapper (per-block partials, better precision).
    return jnp.sum(partials) / jnp.float32(B)


def _reference_triplet_loss(anchor, positive, negative, margin=0.5, eps=1e-6):
    # Pure-JAX reference mirroring F.pairwise_distance / F.relu / mean.
    a = anchor.astype(jnp.float32)
    p = positive.astype(jnp.float32)
    n = negative.astype(jnp.float32)
    dp = jnp.sqrt(jnp.sum((a - p + eps) ** 2, axis=-1))
    dn = jnp.sqrt(jnp.sum((a - n + eps) ** 2, axis=-1))
    return jnp.mean(jnp.maximum(dp - dn + margin, 0.0))


if __name__ == "__main__":
    key = jax.random.PRNGKey(0)
    ka, kp, kn = jax.random.split(key, 3)

    # Small embedding batch; B not divisible by the forced tile size so the
    # ragged-tile masking and multi-block partial-sum paths are exercised
    # (grid = 3 tiles of 8 rows, last tile has 4 valid rows).
    B, D = 20, 64
    anchor = jax.random.normal(ka, (B, D), dtype=jnp.float32)
    positive = jax.random.normal(kp, (B, D), dtype=jnp.float32)
    negative = jax.random.normal(kn, (B, D), dtype=jnp.float32)

    ref = _reference_triplet_loss(anchor, positive, negative, margin=0.5)

    # Forced small tile: multi-step grid + ragged last tile.
    loss_tiled = jax.block_until_ready(
        triplet_loss(anchor, positive, negative, margin=0.5, block_rows=8))
    assert jnp.allclose(loss_tiled, ref, rtol=1e-5, atol=1e-5), (loss_tiled, ref)

    # Auto-tiled path (single full-extent tile at this size).
    loss_auto = jax.block_until_ready(
        triplet_loss(anchor, positive, negative, margin=0.5))
    assert jnp.allclose(loss_auto, ref, rtol=1e-5, atol=1e-5), (loss_auto, ref)

    # bf16 streaming path (halved HBM traffic; looser tolerance vs f32 reference).
    loss_bf16 = jax.block_until_ready(
        triplet_loss(anchor, positive, negative, margin=0.5, cast_to_bf16=True))
    assert jnp.allclose(loss_bf16, ref, rtol=5e-2, atol=5e-2), (loss_bf16, ref)

    print("KERNEL_OK")
</pallas_src>

<mosaic_0001>
module attributes {stable_mosaic.version = 11 : i64} {
  func.func @_triplet_block_kernel(%arg0: i32, %arg1: memref<8x64xf32, #tpu.memory_space<vmem>>, %arg2: memref<8x64xf32, #tpu.memory_space<vmem>>, %arg3: memref<8x64xf32, #tpu.memory_space<vmem>>, %arg4: memref<1x1x1xf32, #tpu.memory_space<vmem>>) attributes {dimension_semantics = [#tpu.dimension_semantics<parallel>], iteration_bounds = array<i64: 3>, scalar_prefetch = 0 : i64, scratch_operands = 0 : i64, tpu.core_type = #tpu.core_type<tc>, window_params = [{transform_indices = @transform_0, window_bounds = array<i64: 8, 64>}, {transform_indices = @transform_1, window_bounds = array<i64: 8, 64>}, {transform_indices = @transform_2, window_bounds = array<i64: 8, 64>}, {transform_indices = @transform_3, window_bounds = array<i64: 1, 1, 1>}]} {
    %c0 = arith.constant 0 : index
    %c0_0 = arith.constant 0 : index
    %0 = vector.load %arg1[%c0, %c0_0] : memref<8x64xf32, #tpu.memory_space<vmem>>, vector<8x64xf32>
    %c0_1 = arith.constant 0 : index
    %c0_2 = arith.constant 0 : index
    %1 = vector.load %arg2[%c0_1, %c0_2] : memref<8x64xf32, #tpu.memory_space<vmem>>, vector<8x64xf32>
    %c0_3 = arith.constant 0 : index
    %c0_4 = arith.constant 0 : index
    %2 = vector.load %arg3[%c0_3, %c0_4] : memref<8x64xf32, #tpu.memory_space<vmem>>, vector<8x64xf32>
    %3 = arith.subf %0, %1 : vector<8x64xf32>
    %cst = arith.constant 9.99999997E-7 : f32
    %4 = vector.broadcast %cst : f32 to vector<8x64xf32>
    %5 = arith.addf %3, %4 : vector<8x64xf32>
    %6 = arith.subf %0, %2 : vector<8x64xf32>
    %cst_5 = arith.constant 9.99999997E-7 : f32
    %7 = vector.broadcast %cst_5 : f32 to vector<8x64xf32>
    %8 = arith.addf %6, %7 : vector<8x64xf32>
    %9 = arith.mulf %5, %5 : vector<8x64xf32>
    %cst_6 = arith.constant dense<0.000000e+00> : vector<8xf32>
    %10 = vector.multi_reduction <add>, %9, %cst_6 [1] : vector<8x64xf32> to vector<8xf32>
    %11 = vector.shape_cast %10 : vector<8xf32> to vector<8x1xf32>
    %12 = math.sqrt %11 : vector<8x1xf32>
    %13 = arith.mulf %8, %8 : vector<8x64xf32>
    %cst_7 = arith.constant dense<0.000000e+00> : vector<8xf32>
    %14 = vector.multi_reduction <add>, %13, %cst_7 [1] : vector<8x64xf32> to vector<8xf32>
    %15 = vector.shape_cast %14 : vector<8xf32> to vector<8x1xf32>
    %16 = math.sqrt %15 : vector<8x1xf32>
    %17 = arith.subf %12, %16 : vector<8x1xf32>
    %cst_8 = arith.constant 5.000000e-01 : f32
    %18 = vector.broadcast %cst_8 : f32 to vector<8x1xf32>
    %19 = arith.addf %17, %18 : vector<8x1xf32>
    %cst_9 = arith.constant 0.000000e+00 : f32
    %20 = vector.broadcast %cst_9 : f32 to vector<8x1xf32>
    %21 = arith.maximumf %19, %20 : vector<8x1xf32>
    %22 = tpu.iota {dimensions = array<i32: 0>} : vector<8x1xi32>
    %c8_i32 = arith.constant 8 : i32
    %23 = arith.muli %arg0, %c8_i32 : i32
    %c20_i32 = arith.constant 20 : i32
    %24 = arith.subi %c20_i32, %23 : i32
    %25 = vector.broadcast %24 : i32 to vector<8x1xi32>
    %26 = arith.cmpi slt, %22, %25 : vector<8x1xi32>
    %cst_10 = arith.constant 0.000000e+00 : f32
    %27 = vector.broadcast %cst_10 : f32 to vector<8x1xf32>
    %28 = arith.select %26, %21, %27 : vector<8x1xi1>, vector<8x1xf32>
    %29 = vector.shape_cast %28 : vector<8x1xf32> to vector<1x8x1xf32>
    %cst_11 = arith.constant dense<0.000000e+00> : vector<1xf32>
    %30 = vector.multi_reduction <add>, %29, %cst_11 [1, 2] : vector<1x8x1xf32> to vector<1xf32>
    %31 = vector.shape_cast %30 : vector<1xf32> to vector<1x1x1xf32>
    %32 = vector.extract %31[0, 0, 0] : f32 from vector<1x1x1xf32>
    %33 = vector.broadcast %32 : f32 to vector<1x1x1xf32>
    %c0_12 = arith.constant 0 : index
    %c0_13 = arith.constant 0 : index
    %c0_14 = arith.constant 0 : index
    %34 = vector.load %arg4[%c0_12, %c0_13, %c0_14] : memref<1x1x1xf32, #tpu.memory_space<vmem>>, vector<1x1x1xf32>
    tpu.vector_store %arg4[%c0_12, %c0_13, %c0_14], %33 {strides = array<i32>} : memref<1x1x1xf32, #tpu.memory_space<vmem>>, vector<1x1x1xf32>,
    return
  }
  func.func @transform_0(%arg0: i32) -> (i32, i32) {
    %c0_i32 = arith.constant 0 : i32
    %c0_i32_0 = arith.constant 0 : i32
    return %arg0, %c0_i32 : i32, i32
  }
  func.func @transform_1(%arg0: i32) -> (i32, i32) {
    %c0_i32 = arith.constant 0 : i32
    %c0_i32_0 = arith.constant 0 : i32
    return %arg0, %c0_i32 : i32, i32
  }
  func.func @transform_2(%arg0: i32) -> (i32, i32) {
    %c0_i32 = arith.constant 0 : i32
    %c0_i32_0 = arith.constant 0 : i32
    return %arg0, %c0_i32 : i32, i32
  }
  func.func @transform_3(%arg0: i32) -> (i32, i32, i32) {
    %c0_i32 = arith.constant 0 : i32
    %c0_i32_0 = arith.constant 0 : i32
    %c0_i32_1 = arith.constant 0 : i32
    return %arg0, %c0_i32, %c0_i32_0 : i32, i32, i32
  }
}

</mosaic_0001>

<llo_original>
// kernel: tpu_custom_call.1
$region0: #{tpu_custom_call.1}
  #allocation0 [shape = 'u32[]', space=smem, size = 0x4, offset = 0x4, fixed_abs, tag = 'smem constant byte address 0x4 - core index']
  #allocation1 [shape = 'u32[144,128]{1,0:T(1,128)}', space=vmem, size = 0x12000, scoped, tag = 'internal scratch']
  %s0 = inlined_call_operand.hbm [shape: f32[20,64], index: 0, kind: input, shape index: {}]
  %s1 = inlined_call_operand.hbm [shape: f32[20,64], index: 1, kind: input, shape index: {}]
  %s2 = inlined_call_operand.hbm [shape: f32[20,64], index: 2, kind: input, shape index: {}]
  %s3 = inlined_call_operand.vmem [shape: f32[3,1,1], index: 3, kind: output, shape index: {}]
  %s4 = sld [smem:[#allocation0]]
  $region57: #{tpu_custom_call.1} parent=0
    _
  %s6 = ssub.s32 1, %s4
  %s7 = scalar_select 0, %s6, %s4
  $region1: #{tpu_custom_call.1} parent=0
    #allocation2 [shape = 'u8[8192]{0}', space=vmem, size = 0x2000, scoped, tag = 'input window, operand 0']
    #allocation3 [shape = 's32[2]{0}', space=sflag, size = 0x8, scoped, tag = 'scoped memory for tpu_custom_call.1']
    #allocation4 [shape = 'u8[8192]{0}', space=vmem, size = 0x2000, scoped, tag = 'input window, operand 1']
    #allocation5 [shape = 's32[2]{0}', space=sflag, size = 0x8, scoped, tag = 'scoped memory for tpu_custom_call.1']
    #allocation6 [shape = 'u8[8192]{0}', space=vmem, size = 0x2000, scoped, tag = 'input window, operand 2']
    %8 = vsyncpa [#allocation3], 0
    %s9 = scalar_lea.sflag [#allocation3], 1
    %10 = vsyncpa %s9, 0
    %11 = vsyncpa [#allocation5], 0
    %s12 = scalar_lea.sflag [#allocation5], 1
    %13 = vsyncpa %s12, 0
    loop: start=0, step=1, limit=5
    $region2: #{tpu_custom_call.1} parent=1 // loop_pre_header
      _
    $region3: #{tpu_custom_call.1} parent=1 // loop_header
      %s15 = sphi 0, %s19
      %p16 = scmp.ge.s32.totalorder %s15, 5
      %s25 = sphi 0, %s27
      %s28 = sphi 0, %s25
      %s29 = sphi 0, %s28
      %s45 = sphi 0, %s29
      %s51 = sphi 0, %s53
      %s54 = sphi 0, %s51
      %s55 = sphi 0, %s54
      %s71 = sphi 0, %s55
      %s77 = sphi 0, %s79
      %s80 = sphi 0, %s77
      %s81 = sphi 0, %s80
      %s97 = sphi 0, %s81
      %s103 = sphi 0, %s105
      %s106 = sphi 0, %s103
      %s107 = sphi 0, %s106
      %s123 = sphi 0, %s107
    $region4: #{tpu_custom_call.1} parent=1 // loop_header_branch
      %18 = sbr.rel (%p16) target = $region8
    $region5: #{tpu_custom_call.1} parent=1 // loop_body
      %s20 = ssub.s32 %s15, 1
      %s21 = ssub.s32 %s15, 2
      %s22 = sadd.s32 %s15, 1
      %s23 = ssub.s32 %s15, %s22
      %p24 = scmp.eq.s32.totalorder %s23, 0
      %s26 = sadd.s32 %s25, 1
      %s27 = scalar_select %p24, %s25, %s26
      %p30 = pneg %p24
      %p31 = scmp.eq.s32.totalorder %s15, 2
      %p32 = por %p30, %p31
      %p33 = scmp.ne.s32.totalorder %s25, %s28
      %p34 = scmp.eq.s32.totalorder %s15, 0
      %p35 = por %p33, %p34
      %p36 = scmp.ne.s32.totalorder %s25, %s28
      %p37 = scmp.eq.s32.totalorder %s20, 2
      %p38 = por %p36, %p37
      %p39 = scmp.ne.s32.totalorder %s28, %s29
      %p40 = scmp.eq.s32.totalorder %s20, 0
      %p41 = por %p39, %p40
      %p42 = scmp.ne.s32.totalorder %s28, %s29
      %p43 = scmp.eq.s32.totalorder %s21, 2
      %p44 = por %p42, %p43
      %p46 = scmp.ne.s32.totalorder %s29, %s45
      %p47 = scmp.eq.s32.totalorder %s21, 0
      %p48 = por %p46, %p47
      %s49 = ssub.s32 %s15, %s22
      %p50 = scmp.eq.s32.totalorder %s49, 0
      %s52 = sadd.s32 %s51, 1
      %s53 = scalar_select %p50, %s51, %s52
      %p56 = pneg %p50
      %p57 = scmp.eq.s32.totalorder %s15, 2
      %p58 = por %p56, %p57
      %p59 = scmp.ne.s32.totalorder %s51, %s54
      %p60 = scmp.eq.s32.totalorder %s15, 0
      %p61 = por %p59, %p60
      %p62 = scmp.ne.s32.totalorder %s51, %s54
      %p63 = scmp.eq.s32.totalorder %s20, 2
      %p64 = por %p62, %p63
      %p65 = scmp.ne.s32.totalorder %s54, %s55
      %p66 = scmp.eq.s32.totalorder %s20, 0
      %p67 = por %p65, %p66
      %p68 = scmp.ne.s32.totalorder %s54, %s55
      %p69 = scmp.eq.s32.totalorder %s21, 2
      %p70 = por %p68, %p69
      %p72 = scmp.ne.s32.totalorder %s55, %s71
      %p73 = scmp.eq.s32.totalorder %s21, 0
      %p74 = por %p72, %p73
      %s75 = ssub.s32 %s15, %s22
      %p76 = scmp.eq.s32.totalorder %s75, 0
      %s78 = sadd.s32 %s77, 1
      %s79 = scalar_select %p76, %s77, %s78
      %p82 = pneg %p76
      %p83 = scmp.eq.s32.totalorder %s15, 2
      %p84 = por %p82, %p83
      %p85 = scmp.ne.s32.totalorder %s77, %s80
      %p86 = scmp.eq.s32.totalorder %s15, 0
      %p87 = por %p85, %p86
      %p88 = scmp.ne.s32.totalorder %s77, %s80
      %p89 = scmp.eq.s32.totalorder %s20, 2
      %p90 = por %p88, %p89
      %p91 = scmp.ne.s32.totalorder %s80, %s81
      %p92 = scmp.eq.s32.totalorder %s20, 0
      %p93 = por %p91, %p92
      %p94 = scmp.ne.s32.totalorder %s80, %s81
      %p95 = scmp.eq.s32.totalorder %s21, 2
      %p96 = por %p94, %p95
      %p98 = scmp.ne.s32.totalorder %s81, %s97
      %p99 = scmp.eq.s32.totalorder %s21, 0
      %p100 = por %p98, %p99
      %s101 = ssub.s32 %s15, %s22
      %p102 = scmp.eq.s32.totalorder %s101, 0
      %s104 = sadd.s32 %s103, 1
      %s105 = scalar_select %p102, %s103, %s104
      %p108 = pneg %p102
      %p109 = scmp.eq.s32.totalorder %s15, 2
      %p110 = por %p108, %p109
      %p111 = scmp.ne.s32.totalorder %s103, %s106
      %p112 = scmp.eq.s32.totalorder %s15, 0
      %p113 = por %p111, %p112
      %p114 = scmp.ne.s32.totalorder %s103, %s106
      %p115 = scmp.eq.s32.totalorder %s20, 2
      %p116 = por %p114, %p115
      %p117 = scmp.ne.s32.totalorder %s106, %s107
      %p118 = scmp.eq.s32.totalorder %s20, 0
      %p119 = por %p117, %p118
      %p120 = scmp.ne.s32.totalorder %s106, %s107
      %p121 = scmp.eq.s32.totalorder %s21, 2
      %p122 = por %p120, %p121
      %p124 = scmp.ne.s32.totalorder %s107, %s123
      %p125 = scmp.eq.s32.totalorder %s21, 0
      %p126 = por %p124, %p125
      %p127 = scmp.le.s32.totalorder 1, %s15
      %p128 = scmp.lt.s32.totalorder %s15, 4
      %p129 = pnand %p127, %p128
      %p130 = pneg %p129
      // Predicated region
      $region9: #{tpu_custom_call.1} parent=5 // pred_check
        _
      $region10: #{tpu_custom_call.1} parent=5 // pred_check_branch
        %132 = sbr.rel (%p129) target = $region12
      $region11: #{tpu_custom_call.1} parent=5 // pred_region
        %s133 = ssub.s32 %s15, 1
      $region12: #{tpu_custom_call.1} parent=5 // pred_fallthru
        _
      %p134 = scmp.lt.s32.totalorder %s15, 3
      // Predicated region
      $region13: #{tpu_custom_call.1} parent=5 // pred_check
        %p135 = pneg %p134
      $region14: #{tpu_custom_call.1} parent=5 // pred_check_branch
        %137 = sbr.rel (%p135) target = $region16
      $region15: #{tpu_custom_call.1} parent=5 // pred_region
        // Predicated region
        $region17: #{tpu_custom_call.1} parent=15 // pred_check
          %p138 = pneg %p35
        $region18: #{tpu_custom_call.1} parent=15 // pred_check_branch
          %140 = sbr.rel (%p138) target = $region20
        $region19: #{tpu_custom_call.1} parent=15 // pred_region
          %s141 = sand.u32 %s25, 1
          %s142 = scalar_lea.sflag [#allocation3], %s141
          %s143 = sand.u32 %s25, 1
          %s144 = smul.addr %s143, 8
          %s145 = scalar_lea.vmem [#allocation2], %s144
          %s147 = ssub.s32 128, 128
          %148 = vsyncadd %s142, %s147
          %s149 = smul.addr %s15, 128
          %s150 = scalar_lea.hbm %s0, %s149
          %s152 = sshll.u32 %s145, 4
          %s153 = int_to_ptr.vmem [resolvable:$true] %s152
          %155 = dma.hbm_to_vmem [thread:$0]  %s150, 128, %s153, %s142
        $region20: #{tpu_custom_call.1} parent=15 // pred_fallthru
          _
        // Predicated region
        $region21: #{tpu_custom_call.1} parent=15 // pred_check
          %p156 = pneg %p61
        $region22: #{tpu_custom_call.1} parent=15 // pred_check_branch
          %158 = sbr.rel (%p156) target = $region24
        $region23: #{tpu_custom_call.1} parent=15 // pred_region
          %s159 = sand.u32 %s15, 1
          %s160 = scalar_lea.sflag [#allocation5], %s159
          %s161 = sand.u32 %s51, 1
          %s162 = smul.addr %s161, 8
          %s163 = scalar_lea.vmem [#allocation4], %s162
          %s165 = ssub.s32 128, 128
          %166 = vsyncadd %s160, %s165
          %s167 = smul.addr %s15, 128
          %s168 = scalar_lea.hbm %s1, %s167
          %s170 = sshll.u32 %s163, 4
          %s171 = int_to_ptr.vmem [resolvable:$true] %s170
          %173 = dma.hbm_to_vmem [thread:$0]  %s168, 128, %s171, %s160
        $region24: #{tpu_custom_call.1} parent=15 // pred_fallthru
          _
        // Predicated region
        $region25: #{tpu_custom_call.1} parent=15 // pred_check
          %p174 = pneg %p87
        $region26: #{tpu_custom_call.1} parent=15 // pred_check_branch
          %176 = sbr.rel (%p174) target = $region28
        $region27: #{tpu_custom_call.1} parent=15 // pred_region
          %s177 = sand.u32 %s15, 1
          %s178 = scalar_lea.sflag [#allocation5], %s177
          %s179 = sand.u32 %s77, 1
          %s180 = smul.addr %s179, 8
          %s181 = scalar_lea.vmem [#allocation6], %s180
          %s183 = ssub.s32 128, 128
          %184 = vsyncadd %s178, %s183
          %s185 = smul.addr %s15, 128
          %s186 = scalar_lea.hbm %s2, %s185
          %s188 = sshll.u32 %s181, 4
          %s189 = int_to_ptr.vmem [resolvable:$true] %s188
          %191 = dma.hbm_to_vmem [thread:$0]  %s186, 128, %s189, %s178
        $region28: #{tpu_custom_call.1} parent=15 // pred_fallthru
          _
      $region16: #{tpu_custom_call.1} parent=5 // pred_fallthru
        _
      %p192 = scmp.le.s32.totalorder 1, %s15
      %p193 = scmp.lt.s32.totalorder %s15, 4
      %p194 = pnand %p192, %p193
      %p195 = pneg %p194
      // Predicated region
      $region29: #{tpu_custom_call.1} parent=5 // pred_check
        _
      $region30: #{tpu_custom_call.1} parent=5 // pred_check_branch
        %197 = sbr.rel (%p194) target = $region32
      $region31: #{tpu_custom_call.1} parent=5 // pred_region
        %s198 = ssub.s32 %s15, 1
        %s199 = sand.u32 %s28, 1
        %s200 = scalar_lea.sflag [#allocation3], %s199
        %s201 = sand.u32 %s28, 1
        %s202 = smul.addr %s201, 8
        %s203 = scalar_lea.vmem [#allocation2], %s202
        // Predicated region
        $region33: #{tpu_custom_call.1} parent=31 // pred_check
          %p204 = pneg %p41
        $region34: #{tpu_custom_call.1} parent=31 // pred_check_branch
          %206 = sbr.rel (%p204) target = $region36
        $region35: #{tpu_custom_call.1} parent=31 // pred_region
          %207 = dma.done %s200, 128
        $region36: #{tpu_custom_call.1} parent=31 // pred_fallthru
          _
        %s208 = sand.u32 %s20, 1
        %s209 = scalar_lea.sflag [#allocation5], %s208
        %s210 = sand.u32 %s54, 1
        %s211 = smul.addr %s210, 8
        %s212 = scalar_lea.vmem [#allocation4], %s211
        // Predicated region
        $region37: #{tpu_custom_call.1} parent=31 // pred_check
          %p213 = pneg %p67
        $region38: #{tpu_custom_call.1} parent=31 // pred_check_branch
          %215 = sbr.rel (%p213) target = $region40
        $region39: #{tpu_custom_call.1} parent=31 // pred_region
          %216 = dma.done %s209, 128
        $region40: #{tpu_custom_call.1} parent=31 // pred_fallthru
          _
        %s217 = sand.u32 %s20, 1
        %s218 = scalar_lea.sflag [#allocation5], %s217
        %s219 = sand.u32 %s80, 1
        %s220 = smul.addr %s219, 8
        %s221 = scalar_lea.vmem [#allocation6], %s220
        // Predicated region
        $region41: #{tpu_custom_call.1} parent=31 // pred_check
          %p222 = pneg %p93
        $region42: #{tpu_custom_call.1} parent=31 // pred_check_branch
          %224 = sbr.rel (%p222) target = $region44
        $region43: #{tpu_custom_call.1} parent=31 // pred_region
          %225 = dma.done %s218, 128
        $region44: #{tpu_custom_call.1} parent=31 // pred_fallthru
          _
        %s226 = sand.u32 %s28, 1
        %s227 = scalar_lea.sflag [#allocation3], %s226
        %s228 = sand.u32 %s28, 1
        %s229 = smul.addr %s228, 8
        %s230 = scalar_lea.vmem [#allocation2], %s229
        %p231 = pneg %p41
        %p232 = pneg %p38
        %s233 = sand.u32 %s20, 1
        %s234 = scalar_lea.sflag [#allocation5], %s233
        %s235 = sand.u32 %s54, 1
        %s236 = smul.addr %s235, 8
        %s237 = scalar_lea.vmem [#allocation4], %s236
        %p238 = pneg %p67
        %p239 = pneg %p64
        %s240 = sand.u32 %s20, 1
        %s241 = scalar_lea.sflag [#allocation5], %s240
        %s242 = sand.u32 %s80, 1
        %s243 = smul.addr %s242, 8
        %s244 = scalar_lea.vmem [#allocation6], %s243
        %p245 = pneg %p93
        %p246 = pneg %p90
        %p247 = pneg %p119
        %p248 = pneg %p116
        %p249 = scmp.lt.s32.totalorder %s20, 2
        %s250 = scalar_select %p249, %s20, 2
        %s251 = scalar_lea.vmem %s3, %s250
        %p252 = scmp.lt.s32.totalorder %s20, 2
        %s253 = scalar_select %p252, %s20, 2
        %s254 = scalar_lea.vmem %s3, %s253
        %v255 = vld [vmem:[%s203] sm:$0xff]
        %v256 = vld [vmem:[%s212] sm:$0xff]
        %v257 = vld [vmem:[%s221] sm:$0xff]
        %v258 = vsub.f32 %v255, %v256
        %v259 = vadd.f32 %v258, 1e-06
        %v260 = vsub.f32 %v255, %v257
        %v261 = vadd.f32 %v260, 1e-06
        %v262 = vmul.f32 %v259, %v259
        %vm263 = vcmask 523264
        %v264 = vsel %vm263, %v262, 0.0
        %265 = vadd.xlane.f32.xlu0 %v264
        %v266 = vpop.xlane.xlu0 %265
        %v267 = vrsqrt.pop %v266
        %v268 = vmul.f32 %v266, %v267
        %vm269 = vcmp.eq.f32.partialorder %v266, inf
        %v270 = vsel %vm269, %v266, %v268
        %vm271 = vcmp.eq.f32.partialorder %v266, 0.0
        %v272 = vand.u32 %v266, 2147483648
        %v273 = vsel %vm271, %v272, %v270
        %v274 = vmul.f32 %v261, %v261
        %v275 = vsel %vm263, %v274, 0.0
        %276 = vadd.xlane.f32.xlu0 %v275
        %v277 = vpop.xlane.xlu0 %276
        %v278 = vrsqrt.pop %v277
        %v279 = vmul.f32 %v277, %v278
        %vm280 = vcmp.eq.f32.partialorder %v277, inf
        %v281 = vsel %vm280, %v277, %v279
        %vm282 = vcmp.eq.f32.partialorder %v277, 0.0
        %v283 = vand.u32 %v277, 2147483648
        %v284 = vsel %vm282, %v283, %v281
        %v285 = vsub.f32 %v273, %v284
        %v286 = vadd.f32 %v285, 0.5
        %v287 = vmax.f32 %v286, 0.0
        %v288 = vlaneseq
        %v289 = vshrl.u32 %v288, 7
        %s290 = smul.u32 %s20, 8
        %s291 = ssub.s32 20, %s290
        %v292 = vstv %s291
        %vm293 = vcmp.lt.s32.totalorder %v289, %v292
        %v294 = vsel %vm293, %v287, 0.0
        %vm295 = vcmask 7168
        %v296 = vsel %vm295, %v294, 0.0
        %297 = vadd.xlane.f32.xlu0 %v296
        %v298 = vpop.xlane.xlu0 %297
        %v299 = vrot.slane %v298, 4
        %v300 = vadd.f32 %v298, %v299
        %v301 = vrot.slane %v300, 2
        %v302 = vadd.f32 %v300, %v301
        %v303 = vrot.slane %v302, 1
        %v304 = vadd.f32 %v302, %v303
        %s305 = vtos %v304
        %v306 = vstv %s305
        %vm307 = vcmask 0
        %308 = vst.msk [vmem:[%s254] sm:$0x1] %vm307, %v306
        %p309 = scmp.lt.s32.totalorder %s20, 2
        %s310 = scalar_select %p309, %s20, 2
        %s311 = scalar_lea.vmem %s3, %s310
        // Predicated region
        $region45: #{tpu_custom_call.1} parent=31 // pred_check
          %p312 = pneg %p116
        $region46: #{tpu_custom_call.1} parent=31 // pred_check_branch
          %314 = sbr.rel (%p312) target = $region48
        $region47: #{tpu_custom_call.1} parent=31 // pred_region
          _
        $region48: #{tpu_custom_call.1} parent=31 // pred_fallthru
          _
      $region32: #{tpu_custom_call.1} parent=5 // pred_fallthru
        _
      %p315 = scmp.le.s32.totalorder 2, %s15
      // Predicated region
      $region49: #{tpu_custom_call.1} parent=5 // pred_check
        %p316 = pneg %p315
      $region50: #{tpu_custom_call.1} parent=5 // pred_check_branch
        %318 = sbr.rel (%p316) target = $region52
      $region51: #{tpu_custom_call.1} parent=5 // pred_region
        %s319 = ssub.s32 %s15, 2
        // Predicated region
        $region53: #{tpu_custom_call.1} parent=51 // pred_check
          %p320 = pneg %p122
        $region54: #{tpu_custom_call.1} parent=51 // pred_check_branch
          %322 = sbr.rel (%p320) target = $region56
        $region55: #{tpu_custom_call.1} parent=51 // pred_region
          %p323 = scmp.lt.s32.totalorder %s21, 2
          %s324 = scalar_select %p323, %s21, 2
          %s325 = scalar_lea.vmem %s3, %s324
        $region56: #{tpu_custom_call.1} parent=51 // pred_fallthru
          _
      $region52: #{tpu_custom_call.1} parent=5 // pred_fallthru
        _
    $region6: #{tpu_custom_call.1} parent=1 // loop_footer
      %s19 = sadd.s32 1, %s15
    $region7: #{tpu_custom_call.1} parent=1 // loop_footer_branch
      %14 = sbr.rel target = $region3
    $region8: #{tpu_custom_call.1} parent=1 // loop_exit
      _
    %326 = vsyncpa [#allocation3], 1
    %s327 = scalar_lea.sflag [#allocation3], 1
    %328 = vsyncpa %s327, 1
    %329 = vsyncpa [#allocation5], 1
    %s330 = scalar_lea.sflag [#allocation5], 1
    %331 = vsyncpa %s330, 1

</llo_original>
